<compile_context>
chip_gen: v7x
topology: tpu7x:2x2x1
jax: 0.10.0
libtpu: 0.0.40
codegen_flags: <defaults>
</compile_context>

<pallas_src>
import math

import jax
import jax.numpy as jnp
from jax.experimental import pallas as pl
from jax.experimental.pallas import tpu as pltpu

_LANES = 128
_MAX_ROWS_TILE = 1024  # 1024 rows x 128 lanes = 128K batch elems per grid step


def _round_up(n, m):
    return ((n + m - 1) // m) * m


def _pick_rows_tile(r_rows):
    """Pick the second-minor (sublane) tile over the 128-lane batch rows.

    Must be either a multiple of 8 or equal to the full row extent (layout
    rule); aim for >= 2 grid steps when possible so v7x's two TensorCores both
    get work; cap so I/O + intermediates stay far under scoped VMEM.
    """
    if r_rows <= 8:
        return max(r_rows, 1)          # block == full dim -> always legal
    return min(_MAX_ROWS_TILE, _round_up(pl.cdiv(r_rows, 2), 8))


def _tanh_affine(rows, w_ref, b_ref):
    """rows: list of n_in slabs (rows_tile, 128). Returns n_out slabs of
    tanh(W @ rows + b), unrolled as scalar-broadcast VPU FMAs (W, b in SMEM)."""
    n_out, n_in = w_ref.shape
    out = []
    for j in range(n_out):
        z = rows[0] * w_ref[j, 0]
        for k in range(1, n_in):
            z = z + rows[k] * w_ref[j, k]
        out.append(jnp.tanh(z + b_ref[j]))   # EUP slot
    return out


def mlp_kernel(w1_ref, b1_ref, w2_ref, b2_ref, w3_ref, b3_ref, x_ref, o_ref):
    # x_ref: (3, rows_tile, 128) VMEM tile, batch on sublanes x lanes.
    # o_ref: (2, rows_tile, 128).
    in_dim = x_ref.shape[0]
    xs = [x_ref[k] for k in range(in_dim)]            # (rows_tile, 128) slabs

    t1 = _tanh_affine(xs, w1_ref, b1_ref)              # 5 slabs
    t2 = _tanh_affine(t1, w2_ref, b2_ref)              # 3 slabs

    n_out, n_in = w3_ref.shape
    for j in range(n_out):                              # 2 output rows
        z = t2[0] * w3_ref[j, 0]
        for k in range(1, n_in):
            z = z + t2[k] * w3_ref[j, k]
        # Only the final layer pays the explicit sigmoid output affine.
        o_ref[j] = 0.5 * jnp.tanh(z + b3_ref[j]) + 0.5  # direct row store


def mlp_net_v1_forward(x, params):
    """x: (B, 3) float32.  params use PyTorch convention: W (out, in), b (out,)."""
    x = x.astype(jnp.float32)
    B, in_dim = x.shape
    w1, b1 = params["w1"], params["b1"]
    w2, b2 = params["w2"], params["b2"]
    w3, b3 = params["w3"], params["b3"]
    out_dim = w3.shape[0]

    # Fold the sigmoid affines into the weights (once, f32, 15+10 floats):
    #   sigmoid(z) = 0.5*tanh(0.5*z) + 0.5
    #   t1 = tanh(0.5*W1 x + 0.5*b1)
    #   t2 = tanh(0.25*W2 t1 + 0.25*sum_k W2[:,k] + 0.5*b2)
    #   y  = 0.5*tanh(0.25*W3 t2 + 0.25*sum_k W3[:,k] + 0.5*b3) + 0.5
    w1p, b1p = 0.5 * w1, 0.5 * b1
    w2p, b2p = 0.25 * w2, 0.5 * b2 + 0.25 * jnp.sum(w2, axis=1)
    w3p, b3p = 0.25 * w3, 0.5 * b3 + 0.25 * jnp.sum(w3, axis=1)

    # Tile geometry: batch -> (R rows) x (128 lanes).
    r_rows = pl.cdiv(max(B, 1), _LANES)
    rows_tile = _pick_rows_tile(r_rows)
    r_pad = _round_up(r_rows, rows_tile)
    b_pad = r_pad * _LANES
    grid = (r_pad // rows_tile,)

    # Layout plumbing kept minimal: one pad + transpose + free reshape of
    # contiguous rows into the lane-dense (features, R, 128) slab.
    # (A feature-major (C, B) model boundary would remove this pass entirely.)
    x_pad = jnp.pad(x, ((0, b_pad - B), (0, 0)))
    x_t = x_pad.T.reshape(in_dim, r_pad, _LANES)

    smem = pl.BlockSpec(memory_space=pltpu.MemorySpace.SMEM)

    y_t = pl.pallas_call(
        mlp_kernel,
        out_shape=jax.ShapeDtypeStruct((out_dim, r_pad, _LANES), jnp.float32),
        grid=grid,
        in_specs=[
            smem, smem,                                            # w1', b1'
            smem, smem,                                            # w2', b2'
            smem, smem,                                            # w3', b3'
            pl.BlockSpec((in_dim, rows_tile, _LANES), lambda i: (0, i, 0)),
        ],
        out_specs=pl.BlockSpec((out_dim, rows_tile, _LANES), lambda i: (0, i, 0)),
        compiler_params=pltpu.CompilerParams(
            dimension_semantics=("parallel",),   # shard batch tiles across TCs
            vmem_limit_bytes=32 * 1024 * 1024,   # headroom on v5e's 16 MiB default
        ),
    )(w1p, b1p, w2p, b2p, w3p, b3p, x_t)

    return y_t.reshape(out_dim, b_pad).T[:B]       # back to (B, 2)


def init_linear(key, fan_in, fan_out):
    """PyTorch nn.Linear default init: uniform(+/- 1/sqrt(fan_in)), W is (out, in)."""
    kw, kb = jax.random.split(key)
    bound = 1.0 / math.sqrt(fan_in)
    w = jax.random.uniform(kw, (fan_out, fan_in), jnp.float32, -bound, bound)
    b = jax.random.uniform(kb, (fan_out,), jnp.float32, -bound, bound)
    return w, b


def reference_forward(x, params):
    h = jax.nn.sigmoid(x @ params["w1"].T + params["b1"])
    h = jax.nn.sigmoid(h @ params["w2"].T + params["b2"])
    h = jax.nn.sigmoid(h @ params["w3"].T + params["b3"])
    return h


if __name__ == "__main__":
    key = jax.random.PRNGKey(0)
    kx, k1, k2, k3, kx2 = jax.random.split(key, 5)

    w1, b1 = init_linear(k1, 3, 5)
    w2, b2 = init_linear(k2, 5, 3)
    w3, b3 = init_linear(k3, 3, 2)
    params = {"w1": w1, "b1": b1, "w2": w2, "b2": b2, "w3": w3, "b3": b3}

    # Small primary test (kernel is structured to scale with large B).
    batch = 8
    x = jax.random.normal(kx, (batch, 3), jnp.float32)
    out = jax.block_until_ready(mlp_net_v1_forward(x, params))
    ref = reference_forward(x, params)
    assert out.shape == (batch, 2), out.shape
    assert jnp.allclose(out, ref, atol=2e-5, rtol=1e-5), "mismatch vs JAX reference"

    # Secondary check: non-multiple batch that needs padding and >1 grid step.
    batch2 = 2500
    x2 = jax.random.normal(kx2, (batch2, 3), jnp.float32)
    out2 = jax.block_until_ready(mlp_net_v1_forward(x2, params))
    ref2 = reference_forward(x2, params)
    assert out2.shape == (batch2, 2), out2.shape
    assert jnp.allclose(out2, ref2, atol=2e-5, rtol=1e-5), "mismatch (padded batch)"

    print("KERNEL_OK")
</pallas_src>

<mosaic_0001>
module attributes {stable_mosaic.version = 11 : i64} {
  func.func @mlp_kernel(%arg0: i32, %arg1: memref<5x3xf32, #tpu.memory_space<smem>>, %arg2: memref<5xf32, #tpu.memory_space<smem>>, %arg3: memref<3x5xf32, #tpu.memory_space<smem>>, %arg4: memref<3xf32, #tpu.memory_space<smem>>, %arg5: memref<2x3xf32, #tpu.memory_space<smem>>, %arg6: memref<2xf32, #tpu.memory_space<smem>>, %arg7: memref<3x1x128xf32, #tpu.memory_space<vmem>>, %arg8: memref<2x1x128xf32, #tpu.memory_space<vmem>>) attributes {dimension_semantics = [#tpu.dimension_semantics<parallel>], iteration_bounds = array<i64: 1>, scalar_prefetch = 0 : i64, scratch_operands = 0 : i64, tpu.core_type = #tpu.core_type<tc>, window_params = [{transform_indices = @transform_0, window_bounds = array<i64: 5, 3>}, {transform_indices = @transform_1, window_bounds = array<i64: 5>}, {transform_indices = @transform_2, window_bounds = array<i64: 3, 5>}, {transform_indices = @transform_3, window_bounds = array<i64: 3>}, {transform_indices = @transform_4, window_bounds = array<i64: 2, 3>}, {transform_indices = @transform_5, window_bounds = array<i64: 2>}, {transform_indices = @transform_6, window_bounds = array<i64: 3, 1, 128>}, {transform_indices = @transform_7, window_bounds = array<i64: 2, 1, 128>}]} {
    %c0 = arith.constant 0 : index
    %c0_0 = arith.constant 0 : index
    %c0_1 = arith.constant 0 : index
    %0 = vector.load %arg7[%c0, %c0_0, %c0_1] : memref<3x1x128xf32, #tpu.memory_space<vmem>>, vector<1x1x128xf32>
    %1 = vector.shape_cast %0 : vector<1x1x128xf32> to vector<1x128xf32>
    %c1 = arith.constant 1 : index
    %c0_2 = arith.constant 0 : index
    %c0_3 = arith.constant 0 : index
    %2 = vector.load %arg7[%c1, %c0_2, %c0_3] : memref<3x1x128xf32, #tpu.memory_space<vmem>>, vector<1x1x128xf32>
    %3 = vector.shape_cast %2 : vector<1x1x128xf32> to vector<1x128xf32>
    %c2 = arith.constant 2 : index
    %c0_4 = arith.constant 0 : index
    %c0_5 = arith.constant 0 : index
    %4 = vector.load %arg7[%c2, %c0_4, %c0_5] : memref<3x1x128xf32, #tpu.memory_space<vmem>>, vector<1x1x128xf32>
    %5 = vector.shape_cast %4 : vector<1x1x128xf32> to vector<1x128xf32>
    %c0_6 = arith.constant 0 : index
    %c0_7 = arith.constant 0 : index
    %6 = memref.load %arg1[%c0_6, %c0_7] : memref<5x3xf32, #tpu.memory_space<smem>>
    %7 = vector.broadcast %6 : f32 to vector<1x128xf32>
    %8 = arith.mulf %1, %7 : vector<1x128xf32>
    %c0_8 = arith.constant 0 : index
    %c1_9 = arith.constant 1 : index
    %9 = memref.load %arg1[%c0_8, %c1_9] : memref<5x3xf32, #tpu.memory_space<smem>>
    %10 = vector.broadcast %9 : f32 to vector<1x128xf32>
    %11 = arith.mulf %3, %10 : vector<1x128xf32>
    %12 = arith.addf %8, %11 : vector<1x128xf32>
    %c0_10 = arith.constant 0 : index
    %c2_11 = arith.constant 2 : index
    %13 = memref.load %arg1[%c0_10, %c2_11] : memref<5x3xf32, #tpu.memory_space<smem>>
    %14 = vector.broadcast %13 : f32 to vector<1x128xf32>
    %15 = arith.mulf %5, %14 : vector<1x128xf32>
    %16 = arith.addf %12, %15 : vector<1x128xf32>
    %c0_12 = arith.constant 0 : index
    %17 = memref.load %arg2[%c0_12] : memref<5xf32, #tpu.memory_space<smem>>
    %18 = vector.broadcast %17 : f32 to vector<1x128xf32>
    %19 = arith.addf %16, %18 : vector<1x128xf32>
    %20 = math.tanh %19 : vector<1x128xf32>
    %c1_13 = arith.constant 1 : index
    %c0_14 = arith.constant 0 : index
    %21 = memref.load %arg1[%c1_13, %c0_14] : memref<5x3xf32, #tpu.memory_space<smem>>
    %22 = vector.broadcast %21 : f32 to vector<1x128xf32>
    %23 = arith.mulf %1, %22 : vector<1x128xf32>
    %c1_15 = arith.constant 1 : index
    %c1_16 = arith.constant 1 : index
    %24 = memref.load %arg1[%c1_15, %c1_16] : memref<5x3xf32, #tpu.memory_space<smem>>
    %25 = vector.broadcast %24 : f32 to vector<1x128xf32>
    %26 = arith.mulf %3, %25 : vector<1x128xf32>
    %27 = arith.addf %23, %26 : vector<1x128xf32>
    %c1_17 = arith.constant 1 : index
    %c2_18 = arith.constant 2 : index
    %28 = memref.load %arg1[%c1_17, %c2_18] : memref<5x3xf32, #tpu.memory_space<smem>>
    %29 = vector.broadcast %28 : f32 to vector<1x128xf32>
    %30 = arith.mulf %5, %29 : vector<1x128xf32>
    %31 = arith.addf %27, %30 : vector<1x128xf32>
    %c1_19 = arith.constant 1 : index
    %32 = memref.load %arg2[%c1_19] : memref<5xf32, #tpu.memory_space<smem>>
    %33 = vector.broadcast %32 : f32 to vector<1x128xf32>
    %34 = arith.addf %31, %33 : vector<1x128xf32>
    %35 = math.tanh %34 : vector<1x128xf32>
    %c2_20 = arith.constant 2 : index
    %c0_21 = arith.constant 0 : index
    %36 = memref.load %arg1[%c2_20, %c0_21] : memref<5x3xf32, #tpu.memory_space<smem>>
    %37 = vector.broadcast %36 : f32 to vector<1x128xf32>
    %38 = arith.mulf %1, %37 : vector<1x128xf32>
    %c2_22 = arith.constant 2 : index
    %c1_23 = arith.constant 1 : index
    %39 = memref.load %arg1[%c2_22, %c1_23] : memref<5x3xf32, #tpu.memory_space<smem>>
    %40 = vector.broadcast %39 : f32 to vector<1x128xf32>
    %41 = arith.mulf %3, %40 : vector<1x128xf32>
    %42 = arith.addf %38, %41 : vector<1x128xf32>
    %c2_24 = arith.constant 2 : index
    %c2_25 = arith.constant 2 : index
    %43 = memref.load %arg1[%c2_24, %c2_25] : memref<5x3xf32, #tpu.memory_space<smem>>
    %44 = vector.broadcast %43 : f32 to vector<1x128xf32>
    %45 = arith.mulf %5, %44 : vector<1x128xf32>
    %46 = arith.addf %42, %45 : vector<1x128xf32>
    %c2_26 = arith.constant 2 : index
    %47 = memref.load %arg2[%c2_26] : memref<5xf32, #tpu.memory_space<smem>>
    %48 = vector.broadcast %47 : f32 to vector<1x128xf32>
    %49 = arith.addf %46, %48 : vector<1x128xf32>
    %50 = math.tanh %49 : vector<1x128xf32>
    %c3 = arith.constant 3 : index
    %c0_27 = arith.constant 0 : index
    %51 = memref.load %arg1[%c3, %c0_27] : memref<5x3xf32, #tpu.memory_space<smem>>
    %52 = vector.broadcast %51 : f32 to vector<1x128xf32>
    %53 = arith.mulf %1, %52 : vector<1x128xf32>
    %c3_28 = arith.constant 3 : index
    %c1_29 = arith.constant 1 : index
    %54 = memref.load %arg1[%c3_28, %c1_29] : memref<5x3xf32, #tpu.memory_space<smem>>
    %55 = vector.broadcast %54 : f32 to vector<1x128xf32>
    %56 = arith.mulf %3, %55 : vector<1x128xf32>
    %57 = arith.addf %53, %56 : vector<1x128xf32>
    %c3_30 = arith.constant 3 : index
    %c2_31 = arith.constant 2 : index
    %58 = memref.load %arg1[%c3_30, %c2_31] : memref<5x3xf32, #tpu.memory_space<smem>>
    %59 = vector.broadcast %58 : f32 to vector<1x128xf32>
    %60 = arith.mulf %5, %59 : vector<1x128xf32>
    %61 = arith.addf %57, %60 : vector<1x128xf32>
    %c3_32 = arith.constant 3 : index
    %62 = memref.load %arg2[%c3_32] : memref<5xf32, #tpu.memory_space<smem>>
    %63 = vector.broadcast %62 : f32 to vector<1x128xf32>
    %64 = arith.addf %61, %63 : vector<1x128xf32>
    %65 = math.tanh %64 : vector<1x128xf32>
    %c4 = arith.constant 4 : index
    %c0_33 = arith.constant 0 : index
    %66 = memref.load %arg1[%c4, %c0_33] : memref<5x3xf32, #tpu.memory_space<smem>>
    %67 = vector.broadcast %66 : f32 to vector<1x128xf32>
    %68 = arith.mulf %1, %67 : vector<1x128xf32>
    %c4_34 = arith.constant 4 : index
    %c1_35 = arith.constant 1 : index
    %69 = memref.load %arg1[%c4_34, %c1_35] : memref<5x3xf32, #tpu.memory_space<smem>>
    %70 = vector.broadcast %69 : f32 to vector<1x128xf32>
    %71 = arith.mulf %3, %70 : vector<1x128xf32>
    %72 = arith.addf %68, %71 : vector<1x128xf32>
    %c4_36 = arith.constant 4 : index
    %c2_37 = arith.constant 2 : index
    %73 = memref.load %arg1[%c4_36, %c2_37] : memref<5x3xf32, #tpu.memory_space<smem>>
    %74 = vector.broadcast %73 : f32 to vector<1x128xf32>
    %75 = arith.mulf %5, %74 : vector<1x128xf32>
    %76 = arith.addf %72, %75 : vector<1x128xf32>
    %c4_38 = arith.constant 4 : index
    %77 = memref.load %arg2[%c4_38] : memref<5xf32, #tpu.memory_space<smem>>
    %78 = vector.broadcast %77 : f32 to vector<1x128xf32>
    %79 = arith.addf %76, %78 : vector<1x128xf32>
    %80 = math.tanh %79 : vector<1x128xf32>
    %c0_39 = arith.constant 0 : index
    %c0_40 = arith.constant 0 : index
    %81 = memref.load %arg3[%c0_39, %c0_40] : memref<3x5xf32, #tpu.memory_space<smem>>
    %82 = vector.broadcast %81 : f32 to vector<1x128xf32>
    %83 = arith.mulf %20, %82 : vector<1x128xf32>
    %c0_41 = arith.constant 0 : index
    %c1_42 = arith.constant 1 : index
    %84 = memref.load %arg3[%c0_41, %c1_42] : memref<3x5xf32, #tpu.memory_space<smem>>
    %85 = vector.broadcast %84 : f32 to vector<1x128xf32>
    %86 = arith.mulf %35, %85 : vector<1x128xf32>
    %87 = arith.addf %83, %86 : vector<1x128xf32>
    %c0_43 = arith.constant 0 : index
    %c2_44 = arith.constant 2 : index
    %88 = memref.load %arg3[%c0_43, %c2_44] : memref<3x5xf32, #tpu.memory_space<smem>>
    %89 = vector.broadcast %88 : f32 to vector<1x128xf32>
    %90 = arith.mulf %50, %89 : vector<1x128xf32>
    %91 = arith.addf %87, %90 : vector<1x128xf32>
    %c0_45 = arith.constant 0 : index
    %c3_46 = arith.constant 3 : index
    %92 = memref.load %arg3[%c0_45, %c3_46] : memref<3x5xf32, #tpu.memory_space<smem>>
    %93 = vector.broadcast %92 : f32 to vector<1x128xf32>
    %94 = arith.mulf %65, %93 : vector<1x128xf32>
    %95 = arith.addf %91, %94 : vector<1x128xf32>
    %c0_47 = arith.constant 0 : index
    %c4_48 = arith.constant 4 : index
    %96 = memref.load %arg3[%c0_47, %c4_48] : memref<3x5xf32, #tpu.memory_space<smem>>
    %97 = vector.broadcast %96 : f32 to vector<1x128xf32>
    %98 = arith.mulf %80, %97 : vector<1x128xf32>
    %99 = arith.addf %95, %98 : vector<1x128xf32>
    %c0_49 = arith.constant 0 : index
    %100 = memref.load %arg4[%c0_49] : memref<3xf32, #tpu.memory_space<smem>>
    %101 = vector.broadcast %100 : f32 to vector<1x128xf32>
    %102 = arith.addf %99, %101 : vector<1x128xf32>
    %103 = math.tanh %102 : vector<1x128xf32>
    %c1_50 = arith.constant 1 : index
    %c0_51 = arith.constant 0 : index
    %104 = memref.load %arg3[%c1_50, %c0_51] : memref<3x5xf32, #tpu.memory_space<smem>>
    %105 = vector.broadcast %104 : f32 to vector<1x128xf32>
    %106 = arith.mulf %20, %105 : vector<1x128xf32>
    %c1_52 = arith.constant 1 : index
    %c1_53 = arith.constant 1 : index
    %107 = memref.load %arg3[%c1_52, %c1_53] : memref<3x5xf32, #tpu.memory_space<smem>>
    %108 = vector.broadcast %107 : f32 to vector<1x128xf32>
    %109 = arith.mulf %35, %108 : vector<1x128xf32>
    %110 = arith.addf %106, %109 : vector<1x128xf32>
    %c1_54 = arith.constant 1 : index
    %c2_55 = arith.constant 2 : index
    %111 = memref.load %arg3[%c1_54, %c2_55] : memref<3x5xf32, #tpu.memory_space<smem>>
    %112 = vector.broadcast %111 : f32 to vector<1x128xf32>
    %113 = arith.mulf %50, %112 : vector<1x128xf32>
    %114 = arith.addf %110, %113 : vector<1x128xf32>
    %c1_56 = arith.constant 1 : index
    %c3_57 = arith.constant 3 : index
    %115 = memref.load %arg3[%c1_56, %c3_57] : memref<3x5xf32, #tpu.memory_space<smem>>
    %116 = vector.broadcast %115 : f32 to vector<1x128xf32>
    %117 = arith.mulf %65, %116 : vector<1x128xf32>
    %118 = arith.addf %114, %117 : vector<1x128xf32>
    %c1_58 = arith.constant 1 : index
    %c4_59 = arith.constant 4 : index
    %119 = memref.load %arg3[%c1_58, %c4_59] : memref<3x5xf32, #tpu.memory_space<smem>>
    %120 = vector.broadcast %119 : f32 to vector<1x128xf32>
    %121 = arith.mulf %80, %120 : vector<1x128xf32>
    %122 = arith.addf %118, %121 : vector<1x128xf32>
    %c1_60 = arith.constant 1 : index
    %123 = memref.load %arg4[%c1_60] : memref<3xf32, #tpu.memory_space<smem>>
    %124 = vector.broadcast %123 : f32 to vector<1x128xf32>
    %125 = arith.addf %122, %124 : vector<1x128xf32>
    %126 = math.tanh %125 : vector<1x128xf32>
    %c2_61 = arith.constant 2 : index
    %c0_62 = arith.constant 0 : index
    %127 = memref.load %arg3[%c2_61, %c0_62] : memref<3x5xf32, #tpu.memory_space<smem>>
    %128 = vector.broadcast %127 : f32 to vector<1x128xf32>
    %129 = arith.mulf %20, %128 : vector<1x128xf32>
    %c2_63 = arith.constant 2 : index
    %c1_64 = arith.constant 1 : index
    %130 = memref.load %arg3[%c2_63, %c1_64] : memref<3x5xf32, #tpu.memory_space<smem>>
    %131 = vector.broadcast %130 : f32 to vector<1x128xf32>
    %132 = arith.mulf %35, %131 : vector<1x128xf32>
    %133 = arith.addf %129, %132 : vector<1x128xf32>
    %c2_65 = arith.constant 2 : index
    %c2_66 = arith.constant 2 : index
    %134 = memref.load %arg3[%c2_65, %c2_66] : memref<3x5xf32, #tpu.memory_space<smem>>
    %135 = vector.broadcast %134 : f32 to vector<1x128xf32>
    %136 = arith.mulf %50, %135 : vector<1x128xf32>
    %137 = arith.addf %133, %136 : vector<1x128xf32>
    %c2_67 = arith.constant 2 : index
    %c3_68 = arith.constant 3 : index
    %138 = memref.load %arg3[%c2_67, %c3_68] : memref<3x5xf32, #tpu.memory_space<smem>>
    %139 = vector.broadcast %138 : f32 to vector<1x128xf32>
    %140 = arith.mulf %65, %139 : vector<1x128xf32>
    %141 = arith.addf %137, %140 : vector<1x128xf32>
    %c2_69 = arith.constant 2 : index
    %c4_70 = arith.constant 4 : index
    %142 = memref.load %arg3[%c2_69, %c4_70] : memref<3x5xf32, #tpu.memory_space<smem>>
    %143 = vector.broadcast %142 : f32 to vector<1x128xf32>
    %144 = arith.mulf %80, %143 : vector<1x128xf32>
    %145 = arith.addf %141, %144 : vector<1x128xf32>
    %c2_71 = arith.constant 2 : index
    %146 = memref.load %arg4[%c2_71] : memref<3xf32, #tpu.memory_space<smem>>
    %147 = vector.broadcast %146 : f32 to vector<1x128xf32>
    %148 = arith.addf %145, %147 : vector<1x128xf32>
    %149 = math.tanh %148 : vector<1x128xf32>
    %c0_72 = arith.constant 0 : index
    %c0_73 = arith.constant 0 : index
    %150 = memref.load %arg5[%c0_72, %c0_73] : memref<2x3xf32, #tpu.memory_space<smem>>
    %151 = vector.broadcast %150 : f32 to vector<1x128xf32>
    %152 = arith.mulf %103, %151 : vector<1x128xf32>
    %c0_74 = arith.constant 0 : index
    %c1_75 = arith.constant 1 : index
    %153 = memref.load %arg5[%c0_74, %c1_75] : memref<2x3xf32, #tpu.memory_space<smem>>
    %154 = vector.broadcast %153 : f32 to vector<1x128xf32>
    %155 = arith.mulf %126, %154 : vector<1x128xf32>
    %156 = arith.addf %152, %155 : vector<1x128xf32>
    %c0_76 = arith.constant 0 : index
    %c2_77 = arith.constant 2 : index
    %157 = memref.load %arg5[%c0_76, %c2_77] : memref<2x3xf32, #tpu.memory_space<smem>>
    %158 = vector.broadcast %157 : f32 to vector<1x128xf32>
    %159 = arith.mulf %149, %158 : vector<1x128xf32>
    %160 = arith.addf %156, %159 : vector<1x128xf32>
    %c0_78 = arith.constant 0 : index
    %161 = memref.load %arg6[%c0_78] : memref<2xf32, #tpu.memory_space<smem>>
    %162 = vector.broadcast %161 : f32 to vector<1x128xf32>
    %163 = arith.addf %160, %162 : vector<1x128xf32>
    %164 = math.tanh %163 : vector<1x128xf32>
    %cst = arith.constant 5.000000e-01 : f32
    %165 = vector.broadcast %cst : f32 to vector<1x128xf32>
    %166 = arith.mulf %165, %164 : vector<1x128xf32>
    %cst_79 = arith.constant 5.000000e-01 : f32
    %167 = vector.broadcast %cst_79 : f32 to vector<1x128xf32>
    %168 = arith.addf %166, %167 : vector<1x128xf32>
    %c0_80 = arith.constant 0 : index
    %c0_81 = arith.constant 0 : index
    %c0_82 = arith.constant 0 : index
    %169 = vector.load %arg8[%c0_80, %c0_81, %c0_82] : memref<2x1x128xf32, #tpu.memory_space<vmem>>, vector<1x1x128xf32>
    %170 = vector.shape_cast %169 : vector<1x1x128xf32> to vector<1x128xf32>
    %171 = vector.shape_cast %168 : vector<1x128xf32> to vector<1x1x128xf32>
    tpu.vector_store %arg8[%c0_80, %c0_81, %c0_82], %171 {strides = array<i32>} : memref<2x1x128xf32, #tpu.memory_space<vmem>>, vector<1x1x128xf32>,
    %c1_83 = arith.constant 1 : index
    %c0_84 = arith.constant 0 : index
    %172 = memref.load %arg5[%c1_83, %c0_84] : memref<2x3xf32, #tpu.memory_space<smem>>
    %173 = vector.broadcast %172 : f32 to vector<1x128xf32>
    %174 = arith.mulf %103, %173 : vector<1x128xf32>
    %c1_85 = arith.constant 1 : index
    %c1_86 = arith.constant 1 : index
    %175 = memref.load %arg5[%c1_85, %c1_86] : memref<2x3xf32, #tpu.memory_space<smem>>
    %176 = vector.broadcast %175 : f32 to vector<1x128xf32>
    %177 = arith.mulf %126, %176 : vector<1x128xf32>
    %178 = arith.addf %174, %177 : vector<1x128xf32>
    %c1_87 = arith.constant 1 : index
    %c2_88 = arith.constant 2 : index
    %179 = memref.load %arg5[%c1_87, %c2_88] : memref<2x3xf32, #tpu.memory_space<smem>>
    %180 = vector.broadcast %179 : f32 to vector<1x128xf32>
    %181 = arith.mulf %149, %180 : vector<1x128xf32>
    %182 = arith.addf %178, %181 : vector<1x128xf32>
    %c1_89 = arith.constant 1 : index
    %183 = memref.load %arg6[%c1_89] : memref<2xf32, #tpu.memory_space<smem>>
    %184 = vector.broadcast %183 : f32 to vector<1x128xf32>
    %185 = arith.addf %182, %184 : vector<1x128xf32>
    %186 = math.tanh %185 : vector<1x128xf32>
    %cst_90 = arith.constant 5.000000e-01 : f32
    %187 = vector.broadcast %cst_90 : f32 to vector<1x128xf32>
    %188 = arith.mulf %187, %186 : vector<1x128xf32>
    %cst_91 = arith.constant 5.000000e-01 : f32
    %189 = vector.broadcast %cst_91 : f32 to vector<1x128xf32>
    %190 = arith.addf %188, %189 : vector<1x128xf32>
    %c1_92 = arith.constant 1 : index
    %c0_93 = arith.constant 0 : index
    %c0_94 = arith.constant 0 : index
    %191 = vector.load %arg8[%c1_92, %c0_93, %c0_94] : memref<2x1x128xf32, #tpu.memory_space<vmem>>, vector<1x1x128xf32>
    %192 = vector.shape_cast %191 : vector<1x1x128xf32> to vector<1x128xf32>
    %193 = vector.shape_cast %190 : vector<1x128xf32> to vector<1x1x128xf32>
    tpu.vector_store %arg8[%c1_92, %c0_93, %c0_94], %193 {strides = array<i32>} : memref<2x1x128xf32, #tpu.memory_space<vmem>>, vector<1x1x128xf32>,
    return
  }
  func.func @transform_0(%arg0: i32) -> (i32, i32) {
    %c0_i32 = arith.constant 0 : i32
    %c0_i32_0 = arith.constant 0 : i32
    %c0_i32_1 = arith.constant 0 : i32
    return %c0_i32, %c0_i32_0 : i32, i32
  }
  func.func @transform_1(%arg0: i32) -> i32 {
    %c0_i32 = arith.constant 0 : i32
    %c0_i32_0 = arith.constant 0 : i32
    return %c0_i32 : i32
  }
  func.func @transform_2(%arg0: i32) -> (i32, i32) {
    %c0_i32 = arith.constant 0 : i32
    %c0_i32_0 = arith.constant 0 : i32
    %c0_i32_1 = arith.constant 0 : i32
    return %c0_i32, %c0_i32_0 : i32, i32
  }
  func.func @transform_3(%arg0: i32) -> i32 {
    %c0_i32 = arith.constant 0 : i32
    %c0_i32_0 = arith.constant 0 : i32
    return %c0_i32 : i32
  }
  func.func @transform_4(%arg0: i32) -> (i32, i32) {
    %c0_i32 = arith.constant 0 : i32
    %c0_i32_0 = arith.constant 0 : i32
    %c0_i32_1 = arith.constant 0 : i32
    return %c0_i32, %c0_i32_0 : i32, i32
  }
  func.func @transform_5(%arg0: i32) -> i32 {
    %c0_i32 = arith.constant 0 : i32
    %c0_i32_0 = arith.constant 0 : i32
    return %c0_i32 : i32
  }
  func.func @transform_6(%arg0: i32) -> (i32, i32, i32) {
    %c0_i32 = arith.constant 0 : i32
    %c0_i32_0 = arith.constant 0 : i32
    %c0_i32_1 = arith.constant 0 : i32
    return %c0_i32, %arg0, %c0_i32_0 : i32, i32, i32
  }
  func.func @transform_7(%arg0: i32) -> (i32, i32, i32) {
    %c0_i32 = arith.constant 0 : i32
    %c0_i32_0 = arith.constant 0 : i32
    %c0_i32_1 = arith.constant 0 : i32
    return %c0_i32, %arg0, %c0_i32_0 : i32, i32, i32
  }
}

</mosaic_0001>

<llo_original>
// kernel: tpu_custom_call.1
$region0: #{tpu_custom_call.1}
  #allocation0 [shape = 'u32[]', space=smem, size = 0x4, offset = 0x4, fixed_abs, tag = 'smem constant byte address 0x4 - core index']
  #allocation1 [shape = 'u32[144,128]{1,0:T(1,128)}', space=vmem, size = 0x12000, scoped, tag = 'internal scratch']
  %s0 = inlined_call_operand.vmem [shape: f32[5,3], index: 0, kind: input, shape index: {}]
  %s1 = inlined_call_operand.vmem [shape: f32[5], index: 1, kind: input, shape index: {}]
  %s2 = inlined_call_operand.vmem [shape: f32[3,5], index: 2, kind: input, shape index: {}]
  %s3 = inlined_call_operand.vmem [shape: f32[3], index: 3, kind: input, shape index: {}]
  %s4 = inlined_call_operand.vmem [shape: f32[2,3], index: 4, kind: input, shape index: {}]
  %s5 = inlined_call_operand.vmem [shape: f32[2], index: 5, kind: input, shape index: {}]
  %s6 = inlined_call_operand.vmem [shape: f32[3,1,128], index: 6, kind: input, shape index: {}]
  %s7 = inlined_call_operand.hbm [shape: f32[2,1,128], index: 7, kind: output, shape index: {}]
  %s8 = sld [smem:[#allocation0]]
  $region62: #{tpu_custom_call.1} parent=0
    _
  %s10 = ssub.s32 1, %s8
  %s11 = scalar_select 0, %s10, %s8
  $region1: #{tpu_custom_call.1} parent=0
    #allocation2 [shape = 'u8[4096]{0}', space=smem, size = 0x1000, scoped, tag = 'input window, operand 0, single buffered']
    #allocation3 [shape = 's32[1]{0}', space=sflag, size = 0x4, scoped, tag = 'scoped memory for tpu_custom_call.1']
    #allocation4 [shape = 's32[1]{0}', space=sflag, size = 0x4, scoped, tag = 'scoped memory for tpu_custom_call.1']
    #allocation5 [shape = 'u8[512]{0}', space=smem, size = 0x200, scoped, tag = 'input window, operand 1, single buffered']
    #allocation6 [shape = 's32[1]{0}', space=sflag, size = 0x4, scoped, tag = 'scoped memory for tpu_custom_call.1']
    #allocation7 [shape = 'u8[2048]{0}', space=smem, size = 0x800, scoped, tag = 'input window, operand 2, single buffered']
    #allocation8 [shape = 'u8[512]{0}', space=smem, size = 0x200, scoped, tag = 'input window, operand 3, single buffered']
    #allocation9 [shape = 's32[1]{0}', space=sflag, size = 0x4, scoped, tag = 'scoped memory for tpu_custom_call.1']
    #allocation10 [shape = 'u8[1024]{0}', space=smem, size = 0x400, scoped, tag = 'input window, operand 4, single buffered']
    #allocation11 [shape = 'u8[512]{0}', space=smem, size = 0x200, scoped, tag = 'input window, operand 5, single buffered']
    #allocation12 [shape = 's32[1]{0}', space=sflag, size = 0x4, scoped, tag = 'scoped memory for tpu_custom_call.1']
    #allocation13 [shape = 'u8[1024]{0}', space=vmem, size = 0x400, scoped, tag = 'output window, operand 0, single buffered']
    %12 = vsyncpa [#allocation4], 0
    %13 = vsyncpa [#allocation6], 0
    %14 = vsyncpa [#allocation9], 0
    %15 = vsyncpa [#allocation12], 0
    %16 = vsyncpa [#allocation3], 0
    // Predicated region
    $region2: #{tpu_custom_call.1} parent=1 // pred_check
      _
    $region3: #{tpu_custom_call.1} parent=1 // pred_check_branch
      %18 = sbr.rel (0) target = $region5
    $region4: #{tpu_custom_call.1} parent=1 // pred_region
      %s20 = ssub.s32 128, 128
      %21 = vsyncadd [#allocation4], %s20
      %s23 = sshll.u32 %s0, 4
      %s24 = int_to_ptr.vmem [resolvable:$true] %s23
      %26 = dma.vmem_to_smem %s24, 128, [#allocation2], [#allocation4]
    $region5: #{tpu_custom_call.1} parent=1 // pred_fallthru
      _
    // Predicated region
    $region6: #{tpu_custom_call.1} parent=1 // pred_check
      _
    $region7: #{tpu_custom_call.1} parent=1 // pred_check_branch
      %28 = sbr.rel (0) target = $region9
    $region8: #{tpu_custom_call.1} parent=1 // pred_region
      %s30 = ssub.s32 16, 16
      %31 = vsyncadd [#allocation6], %s30
      %s33 = sshll.u32 %s1, 4
      %s34 = int_to_ptr.vmem [resolvable:$true] %s33
      %36 = dma.vmem_to_smem %s34, 16, [#allocation5], [#allocation6]
    $region9: #{tpu_custom_call.1} parent=1 // pred_fallthru
      _
    // Predicated region
    $region10: #{tpu_custom_call.1} parent=1 // pred_check
      _
    $region11: #{tpu_custom_call.1} parent=1 // pred_check_branch
      %38 = sbr.rel (0) target = $region13
    $region12: #{tpu_custom_call.1} parent=1 // pred_region
      %s40 = ssub.s32 64, 64
      %41 = vsyncadd [#allocation6], %s40
      %s43 = sshll.u32 %s2, 4
      %s44 = int_to_ptr.vmem [resolvable:$true] %s43
      %46 = dma.vmem_to_smem %s44, 64, [#allocation7], [#allocation6]
    $region13: #{tpu_custom_call.1} parent=1 // pred_fallthru
      _
    // Predicated region
    $region14: #{tpu_custom_call.1} parent=1 // pred_check
      _
    $region15: #{tpu_custom_call.1} parent=1 // pred_check_branch
      %48 = sbr.rel (0) target = $region17
    $region16: #{tpu_custom_call.1} parent=1 // pred_region
      %s50 = ssub.s32 16, 16
      %51 = vsyncadd [#allocation9], %s50
      %s53 = sshll.u32 %s3, 4
      %s54 = int_to_ptr.vmem [resolvable:$true] %s53
      %56 = dma.vmem_to_smem %s54, 16, [#allocation8], [#allocation9]
    $region17: #{tpu_custom_call.1} parent=1 // pred_fallthru
      _
    // Predicated region
    $region18: #{tpu_custom_call.1} parent=1 // pred_check
      _
    $region19: #{tpu_custom_call.1} parent=1 // pred_check_branch
      %58 = sbr.rel (0) target = $region21
    $region20: #{tpu_custom_call.1} parent=1 // pred_region
      %s60 = ssub.s32 32, 32
      %61 = vsyncadd [#allocation9], %s60
      %s63 = sshll.u32 %s4, 4
      %s64 = int_to_ptr.vmem [resolvable:$true] %s63
      %66 = dma.vmem_to_smem %s64, 32, [#allocation10], [#allocation9]
    $region21: #{tpu_custom_call.1} parent=1 // pred_fallthru
      _
    // Predicated region
    $region22: #{tpu_custom_call.1} parent=1 // pred_check
      _
    $region23: #{tpu_custom_call.1} parent=1 // pred_check_branch
      %68 = sbr.rel (0) target = $region25
    $region24: #{tpu_custom_call.1} parent=1 // pred_region
      %s70 = ssub.s32 16, 16
      %71 = vsyncadd [#allocation12], %s70
      %s73 = sshll.u32 %s5, 4
      %s74 = int_to_ptr.vmem [resolvable:$true] %s73
      %76 = dma.vmem_to_smem %s74, 16, [#allocation11], [#allocation12]
    $region25: #{tpu_custom_call.1} parent=1 // pred_fallthru
      _
    // Predicated region
    $region26: #{tpu_custom_call.1} parent=1 // pred_check
      _
    $region27: #{tpu_custom_call.1} parent=1 // pred_check_branch
      %78 = sbr.rel (0) target = $region29
    $region28: #{tpu_custom_call.1} parent=1 // pred_region
      _
    $region29: #{tpu_custom_call.1} parent=1 // pred_fallthru
      _
    // Predicated region
    $region30: #{tpu_custom_call.1} parent=1 // pred_check
      _
    $region31: #{tpu_custom_call.1} parent=1 // pred_check_branch
      %80 = sbr.rel (0) target = $region33
    $region32: #{tpu_custom_call.1} parent=1 // pred_region
      %81 = dma.done [#allocation4], 128
    $region33: #{tpu_custom_call.1} parent=1 // pred_fallthru
      _
    // Predicated region
    $region34: #{tpu_custom_call.1} parent=1 // pred_check
      _
    $region35: #{tpu_custom_call.1} parent=1 // pred_check_branch
      %83 = sbr.rel (0) target = $region37
    $region36: #{tpu_custom_call.1} parent=1 // pred_region
      %84 = dma.done [#allocation6], 16
    $region37: #{tpu_custom_call.1} parent=1 // pred_fallthru
      _
    // Predicated region
    $region38: #{tpu_custom_call.1} parent=1 // pred_check
      _
    $region39: #{tpu_custom_call.1} parent=1 // pred_check_branch
      %86 = sbr.rel (0) target = $region41
    $region40: #{tpu_custom_call.1} parent=1 // pred_region
      %87 = dma.done [#allocation6], 64
    $region41: #{tpu_custom_call.1} parent=1 // pred_fallthru
      _
    // Predicated region
    $region42: #{tpu_custom_call.1} parent=1 // pred_check
      _
    $region43: #{tpu_custom_call.1} parent=1 // pred_check_branch
      %89 = sbr.rel (0) target = $region45
    $region44: #{tpu_custom_call.1} parent=1 // pred_region
      %90 = dma.done [#allocation9], 16
    $region45: #{tpu_custom_call.1} parent=1 // pred_fallthru
      _
    // Predicated region
    $region46: #{tpu_custom_call.1} parent=1 // pred_check
      _
    $region47: #{tpu_custom_call.1} parent=1 // pred_check_branch
      %92 = sbr.rel (0) target = $region49
    $region48: #{tpu_custom_call.1} parent=1 // pred_region
      %93 = dma.done [#allocation9], 32
    $region49: #{tpu_custom_call.1} parent=1 // pred_fallthru
      _
    // Predicated region
    $region50: #{tpu_custom_call.1} parent=1 // pred_check
      _
    $region51: #{tpu_custom_call.1} parent=1 // pred_check_branch
      %95 = sbr.rel (0) target = $region53
    $region52: #{tpu_custom_call.1} parent=1 // pred_region
      %96 = dma.done [#allocation12], 16
    $region53: #{tpu_custom_call.1} parent=1 // pred_fallthru
      _
    %97 = sfence
    %v98 = vld [vmem:[%s6] sm:$0x1]
    %s99 = scalar_lea.vmem %s6, 1
    %v100 = vld [vmem:[%s99] sm:$0x1]
    %s101 = scalar_lea.vmem %s6, 2
    %v102 = vld [vmem:[%s101] sm:$0x1]
    %s103 = sld [smem:[#allocation2]]
    %v104 = vstv %s103
    %v105 = vmul.f32 %v98, %v104
    %s106 = sld [smem:[#allocation2 + $0x1]]
    %v107 = vstv %s106
    %v108 = vmul.f32 %v100, %v107
    %v109 = vadd.f32 %v105, %v108
    %s110 = sld [smem:[#allocation2 + $0x2]]
    %v111 = vstv %s110
    %v112 = vmul.f32 %v102, %v111
    %v113 = vadd.f32 %v109, %v112
    %s114 = sld [smem:[#allocation5]]
    %v115 = vstv %s114
    %v116 = vadd.f32 %v113, %v115
    %v117 = vtanh.pop %v116
    %s118 = sld [smem:[#allocation2 + $0x80]]
    %v119 = vstv %s118
    %v120 = vmul.f32 %v98, %v119
    %s121 = sld [smem:[#allocation2 + $0x81]]
    %v122 = vstv %s121
    %v123 = vmul.f32 %v100, %v122
    %v124 = vadd.f32 %v120, %v123
    %s125 = sld [smem:[#allocation2 + $0x82]]
    %v126 = vstv %s125
    %v127 = vmul.f32 %v102, %v126
    %v128 = vadd.f32 %v124, %v127
    %s129 = sld [smem:[#allocation5 + $0x1]]
    %v130 = vstv %s129
    %v131 = vadd.f32 %v128, %v130
    %v132 = vtanh.pop %v131
    %s133 = sld [smem:[#allocation2 + $0x100]]
    %v134 = vstv %s133
    %v135 = vmul.f32 %v98, %v134
    %s136 = sld [smem:[#allocation2 + $0x101]]
    %v137 = vstv %s136
    %v138 = vmul.f32 %v100, %v137
    %v139 = vadd.f32 %v135, %v138
    %s140 = sld [smem:[#allocation2 + $0x102]]
    %v141 = vstv %s140
    %v142 = vmul.f32 %v102, %v141
    %v143 = vadd.f32 %v139, %v142
    %s144 = sld [smem:[#allocation5 + $0x2]]
    %v145 = vstv %s144
    %v146 = vadd.f32 %v143, %v145
    %v147 = vtanh.pop %v146
    %s148 = sld [smem:[#allocation2 + $0x180]]
    %v149 = vstv %s148
    %v150 = vmul.f32 %v98, %v149
    %s151 = sld [smem:[#allocation2 + $0x181]]
    %v152 = vstv %s151
    %v153 = vmul.f32 %v100, %v152
    %v154 = vadd.f32 %v150, %v153
    %s155 = sld [smem:[#allocation2 + $0x182]]
    %v156 = vstv %s155
    %v157 = vmul.f32 %v102, %v156
    %v158 = vadd.f32 %v154, %v157
    %s159 = sld [smem:[#allocation5 + $0x3]]
    %v160 = vstv %s159
    %v161 = vadd.f32 %v158, %v160
    %v162 = vtanh.pop %v161
    %s163 = sld [smem:[#allocation2 + $0x200]]
    %v164 = vstv %s163
    %v165 = vmul.f32 %v98, %v164
    %s166 = sld [smem:[#allocation2 + $0x201]]
    %v167 = vstv %s166
    %v168 = vmul.f32 %v100, %v167
    %v169 = vadd.f32 %v165, %v168
    %s170 = sld [smem:[#allocation2 + $0x202]]
    %v171 = vstv %s170
    %v172 = vmul.f32 %v102, %v171
    %v173 = vadd.f32 %v169, %v172
    %s174 = sld [smem:[#allocation5 + $0x4]]
    %v175 = vstv %s174
    %v176 = vadd.f32 %v173, %v175
    %v177 = vtanh.pop %v176
    %s178 = sld [smem:[#allocation7]]
    %v179 = vstv %s178
    %v180 = vmul.f32 %v117, %v179
    %s181 = sld [smem:[#allocation7 + $0x1]]
    %v182 = vstv %s181
    %v183 = vmul.f32 %v132, %v182
    %v184 = vadd.f32 %v180, %v183
    %s185 = sld [smem:[#allocation7 + $0x2]]
    %v186 = vstv %s185
    %v187 = vmul.f32 %v147, %v186
    %v188 = vadd.f32 %v184, %v187
    %s189 = sld [smem:[#allocation7 + $0x3]]
    %v190 = vstv %s189
    %v191 = vmul.f32 %v162, %v190
    %v192 = vadd.f32 %v188, %v191
    %s193 = sld [smem:[#allocation7 + $0x4]]
    %v194 = vstv %s193
    %v195 = vmul.f32 %v177, %v194
    %v196 = vadd.f32 %v192, %v195
    %s197 = sld [smem:[#allocation8]]
    %v198 = vstv %s197
    %v199 = vadd.f32 %v196, %v198
    %v200 = vtanh.pop %v199
    %s201 = sld [smem:[#allocation7 + $0x80]]
    %v202 = vstv %s201
    %v203 = vmul.f32 %v117, %v202
    %s204 = sld [smem:[#allocation7 + $0x81]]
    %v205 = vstv %s204
    %v206 = vmul.f32 %v132, %v205
    %v207 = vadd.f32 %v203, %v206
    %s208 = sld [smem:[#allocation7 + $0x82]]
    %v209 = vstv %s208
    %v210 = vmul.f32 %v147, %v209
    %v211 = vadd.f32 %v207, %v210
    %s212 = sld [smem:[#allocation7 + $0x83]]
    %v213 = vstv %s212
    %v214 = vmul.f32 %v162, %v213
    %v215 = vadd.f32 %v211, %v214
    %s216 = sld [smem:[#allocation7 + $0x84]]
    %v217 = vstv %s216
    %v218 = vmul.f32 %v177, %v217
    %v219 = vadd.f32 %v215, %v218
    %s220 = sld [smem:[#allocation8 + $0x1]]
    %v221 = vstv %s220
    %v222 = vadd.f32 %v219, %v221
    %v223 = vtanh.pop %v222
    %s224 = sld [smem:[#allocation7 + $0x100]]
    %v225 = vstv %s224
    %v226 = vmul.f32 %v117, %v225
    %s227 = sld [smem:[#allocation7 + $0x101]]
    %v228 = vstv %s227
    %v229 = vmul.f32 %v132, %v228
    %v230 = vadd.f32 %v226, %v229
    %s231 = sld [smem:[#allocation7 + $0x102]]
    %v232 = vstv %s231
    %v233 = vmul.f32 %v147, %v232
    %v234 = vadd.f32 %v230, %v233
    %s235 = sld [smem:[#allocation7 + $0x103]]
    %v236 = vstv %s235
    %v237 = vmul.f32 %v162, %v236
    %v238 = vadd.f32 %v234, %v237
    %s239 = sld [smem:[#allocation7 + $0x104]]
    %v240 = vstv %s239
    %v241 = vmul.f32 %v177, %v240
    %v242 = vadd.f32 %v238, %v241
    %s243 = sld [smem:[#allocation8 + $0x2]]
    %v244 = vstv %s243
    %v245 = vadd.f32 %v242, %v244
    %v246 = vtanh.pop %v245
    %s247 = sld [smem:[#allocation10]]
    %v248 = vstv %s247
    %v249 = vmul.f32 %v200, %v248
    %s250 = sld [smem:[#allocation10 + $0x1]]
    %v251 = vstv %s250
    %v252 = vmul.f32 %v223, %v251
    %v253 = vadd.f32 %v249, %v252
    %s254 = sld [smem:[#allocation10 + $0x2]]
    %v255 = vstv %s254
    %v256 = vmul.f32 %v246, %v255
    %v257 = vadd.f32 %v253, %v256
    %s258 = sld [smem:[#allocation11]]
    %v259 = vstv %s258
    %v260 = vadd.f32 %v257, %v259
    %v261 = vtanh.pop %v260
    %v262 = vmul.f32 %v261, 0.5
    %v263 = vadd.f32 %v262, 0.5
    %264 = vst [vmem:[#allocation13] sm:$0x1] %v263
    %s265 = sld [smem:[#allocation10 + $0x80]]
    %v266 = vstv %s265
    %v267 = vmul.f32 %v200, %v266
    %s268 = sld [smem:[#allocation10 + $0x81]]
    %v269 = vstv %s268
    %v270 = vmul.f32 %v223, %v269
    %v271 = vadd.f32 %v267, %v270
    %s272 = sld [smem:[#allocation10 + $0x82]]
    %v273 = vstv %s272
    %v274 = vmul.f32 %v246, %v273
    %v275 = vadd.f32 %v271, %v274
    %s276 = sld [smem:[#allocation11 + $0x1]]
    %v277 = vstv %s276
    %v278 = vadd.f32 %v275, %v277
    %v279 = vtanh.pop %v278
    %v280 = vmul.f32 %v279, 0.5
    %v281 = vadd.f32 %v280, 0.5
    %s282 = scalar_lea.vmem [#allocation13], 1
    %283 = vst [vmem:[%s282] sm:$0x1] %v281
    // Predicated region
    $region54: #{tpu_custom_call.1} parent=1 // pred_check
      _
    $region55: #{tpu_custom_call.1} parent=1 // pred_check_branch
      %285 = sbr.rel (0) target = $region57
    $region56: #{tpu_custom_call.1} parent=1 // pred_region
      %s287 = ssub.s32 32, 32
      %288 = vsyncadd [#allocation3], %s287
      %s289 = sshll.u32 [#allocation13], 4
      %s290 = int_to_ptr.vmem [resolvable:$true] %s289
      %295 = dma.vmem_to_hbm [thread:$0]  %s290, 32, %s7, [#allocation3], 16, 16, 1
    $region57: #{tpu_custom_call.1} parent=1 // pred_fallthru
      _
    // Predicated region
    $region58: #{tpu_custom_call.1} parent=1 // pred_check
      _
    $region59: #{tpu_custom_call.1} parent=1 // pred_check_branch
      %297 = sbr.rel (0) target = $region61
    $region60: #{tpu_custom_call.1} parent=1 // pred_region
      %298 = dma.done [#allocation3], 32
    $region61: #{tpu_custom_call.1} parent=1 // pred_fallthru
      _
    %299 = vsyncpa [#allocation3], 1
    %300 = vsyncpa [#allocation4], 1
    %301 = vsyncpa [#allocation6], 1
    %302 = vsyncpa [#allocation9], 1
    %303 = vsyncpa [#allocation12], 1

</llo_original>
